<compile_context>
chip_gen: v7x
topology: tpu7x:2x2x1
jax: 0.10.0
libtpu: 0.0.40
codegen_flags: <defaults>
</compile_context>

<pallas_src>
import math

import jax
import jax.numpy as jnp
from jax.experimental import pallas as pl
from jax.experimental.pallas import tpu as pltpu


def _qnetwork_kernel(
    s_ref, a_ref,                       # (TB, ni), (TB, na)
    w1s_ref, w1a_ref, b14_ref,          # (ni, 2H), (na, 2H), (1, 2H)   fused layer-1
    w2_ref, b2_ref,                     # (H, H), (1, H)                Q1 layer-2
    w5_ref, b5_ref,                     # (H, H), (1, H)                Q2 layer-2
    w3_ref, b3_ref,                     # (1, H), (1, 1)                Q1 output row
    w6_ref, b6_ref,                     # (1, H), (1, 1)                Q2 output row
    q1_ref, q2_ref,                     # (TB, 1), (TB, 1)
):
    H = w2_ref.shape[0]
    s = s_ref[...]
    a = a_ref[...]

    # --- fused layer 1 of both heads (split over state/action: no xu concat) ---
    h = (
        jnp.dot(s, w1s_ref[...], preferred_element_type=jnp.float32)
        + jnp.dot(a, w1a_ref[...], preferred_element_type=jnp.float32)
        + b14_ref[...].astype(jnp.float32)
    )
    h = jnp.maximum(h, 0.0)
    h1 = h[:, :H]      # Q1 head activations
    h2 = h[:, H:]      # Q2 head activations

    # --- per-head layer 2 (MXU, f32 accumulation) ---
    w_dtype = w2_ref.dtype
    h1 = jnp.dot(h1.astype(w_dtype), w2_ref[...],
                 preferred_element_type=jnp.float32) + b2_ref[...].astype(jnp.float32)
    h1 = jnp.maximum(h1, 0.0)
    h2 = jnp.dot(h2.astype(w_dtype), w5_ref[...],
                 preferred_element_type=jnp.float32) + b5_ref[...].astype(jnp.float32)
    h2 = jnp.maximum(h2, 0.0)

    # --- final layer as VPU multiply + lane reduction (avoids N=1 MXU matmul) ---
    q1 = jnp.sum(h1 * w3_ref[...].astype(jnp.float32), axis=-1, keepdims=True) \
        + b3_ref[...].astype(jnp.float32)
    q2 = jnp.sum(h2 * w6_ref[...].astype(jnp.float32), axis=-1, keepdims=True) \
        + b6_ref[...].astype(jnp.float32)

    q1_ref[...] = q1.astype(q1_ref.dtype)
    q2_ref[...] = q2.astype(q2_ref.dtype)


def qnetwork_forward(state, action, params, *, block_b=1024):
    """Pallas implementation of QNetwork.forward(state, action) -> (q1, q2)."""
    B, ni = state.shape
    na = action.shape[1]
    H = params["w2"].shape[0]
    in_dim = ni + na

    # Batch tile: full batch if it is small, otherwise a sublane-aligned tile.
    if B <= block_b:
        tb = B
    else:
        tb = max(8, (block_b // 8) * 8)
    grid = (pl.cdiv(B, tb),)

    # Fold the two heads' first layers into one (in_dim, 2H) weight, then split
    # along the input dim so [state, action] never has to be concatenated.
    w14 = jnp.concatenate([params["w1"], params["w4"]], axis=1)   # (in_dim, 2H)
    w1s, w1a = w14[:ni], w14[ni:]
    b14 = jnp.concatenate([params["b1"], params["b4"]], axis=1)   # (1, 2H)
    w3_row = params["w3"].reshape(1, H)                           # (H,1) -> (1,H)
    w6_row = params["w6"].reshape(1, H)

    batch_map = lambda i: (i, 0)
    const_map = lambda i: (0, 0)

    weight_args = [
        w1s, w1a, b14,
        params["w2"], params["b2"],
        params["w5"], params["b5"],
        w3_row, params["b3"],
        w6_row, params["b6"],
    ]

    in_specs = [
        pl.BlockSpec((tb, ni), batch_map),
        pl.BlockSpec((tb, na), batch_map),
    ] + [pl.BlockSpec(w.shape, const_map) for w in weight_args]

    out_specs = (
        pl.BlockSpec((tb, 1), batch_map),
        pl.BlockSpec((tb, 1), batch_map),
    )
    out_shape = (
        jax.ShapeDtypeStruct((B, 1), jnp.float32),
        jax.ShapeDtypeStruct((B, 1), jnp.float32),
    )

    itemsize = jnp.dtype(state.dtype).itemsize
    flops = 2 * B * (in_dim * 2 * H + 2 * H * H + 2 * H)
    bytes_accessed = itemsize * (
        B * (in_dim + 2) + in_dim * 2 * H + 2 * H * H + 4 * H + 2
    )

    q1, q2 = pl.pallas_call(
        _qnetwork_kernel,
        grid=grid,
        in_specs=in_specs,
        out_specs=out_specs,
        out_shape=out_shape,
        compiler_params=pltpu.CompilerParams(
            dimension_semantics=("parallel",),
        ),
        cost_estimate=pl.CostEstimate(
            flops=flops, transcendentals=0, bytes_accessed=bytes_accessed
        ),
    )(state, action, *weight_args)
    return q1, q2


def _xavier_uniform(key, fan_in, fan_out, gain=1.0):
    """Matches torch.nn.init.xavier_uniform_ (gain=1); stored as [in, out]."""
    bound = gain * math.sqrt(6.0 / (fan_in + fan_out))
    return jax.random.uniform(
        key, (fan_in, fan_out), minval=-bound, maxval=bound, dtype=jnp.float32
    )


def init_qnetwork_params(key, num_inputs, num_actions, hidden_dim):
    in_dim = num_inputs + num_actions
    keys = jax.random.split(key, 6)
    return {
        "w1": _xavier_uniform(keys[0], in_dim, hidden_dim),
        "b1": jnp.zeros((1, hidden_dim), jnp.float32),
        "w2": _xavier_uniform(keys[1], hidden_dim, hidden_dim),
        "b2": jnp.zeros((1, hidden_dim), jnp.float32),
        "w3": _xavier_uniform(keys[2], hidden_dim, 1),
        "b3": jnp.zeros((1, 1), jnp.float32),
        "w4": _xavier_uniform(keys[3], in_dim, hidden_dim),
        "b4": jnp.zeros((1, hidden_dim), jnp.float32),
        "w5": _xavier_uniform(keys[4], hidden_dim, hidden_dim),
        "b5": jnp.zeros((1, hidden_dim), jnp.float32),
        "w6": _xavier_uniform(keys[5], hidden_dim, 1),
        "b6": jnp.zeros((1, 1), jnp.float32),
    }


def _reference_forward(state, action, p):
    """Pure-JAX reference for correctness checking."""
    xu = jnp.concatenate([state, action], axis=1)
    h1 = jax.nn.relu(xu @ p["w1"] + p["b1"])
    h1 = jax.nn.relu(h1 @ p["w2"] + p["b2"])
    q1 = h1 @ p["w3"] + p["b3"]
    h2 = jax.nn.relu(xu @ p["w4"] + p["b4"])
    h2 = jax.nn.relu(h2 @ p["w5"] + p["b5"])
    q2 = h2 @ p["w6"] + p["b6"]
    return q1, q2


if __name__ == "__main__":
    # Small deterministic example: state [B, num_inputs], action [B, num_actions].
    B, num_inputs, num_actions, hidden_dim = 2, 12, 4, 32

    key = jax.random.PRNGKey(0)
    k_params, k_state, k_action, k_state2, k_action2 = jax.random.split(key, 5)

    params = init_qnetwork_params(k_params, num_inputs, num_actions, hidden_dim)
    state = jax.random.normal(k_state, (B, num_inputs), dtype=jnp.float32)
    action = jax.random.normal(k_action, (B, num_actions), dtype=jnp.float32)

    q1, q2 = qnetwork_forward(state, action, params)
    jax.block_until_ready((q1, q2))

    q1_ref, q2_ref = _reference_forward(state, action, params)
    assert q1.shape == (B, 1) and q2.shape == (B, 1)
    assert jnp.allclose(q1, q1_ref, atol=1e-4, rtol=1e-4)
    assert jnp.allclose(q2, q2_ref, atol=1e-4, rtol=1e-4)

    # Second check: batch larger than the tile and NOT a multiple of it, to
    # exercise the grid pipeline and masked edge-block handling.
    B2 = 300
    state2 = jax.random.normal(k_state2, (B2, num_inputs), dtype=jnp.float32)
    action2 = jax.random.normal(k_action2, (B2, num_actions), dtype=jnp.float32)
    q1b, q2b = qnetwork_forward(state2, action2, params, block_b=128)
    jax.block_until_ready((q1b, q2b))
    q1b_ref, q2b_ref = _reference_forward(state2, action2, params)
    assert q1b.shape == (B2, 1) and q2b.shape == (B2, 1)
    assert jnp.allclose(q1b, q1b_ref, atol=1e-4, rtol=1e-4)
    assert jnp.allclose(q2b, q2b_ref, atol=1e-4, rtol=1e-4)

    print("KERNEL_OK")
</pallas_src>

<mosaic_0001>
module attributes {stable_mosaic.version = 11 : i64} {
  func.func @_qnetwork_kernel(%arg0: i32, %arg1: memref<2x12xf32, #tpu.memory_space<vmem>>, %arg2: memref<2x4xf32, #tpu.memory_space<vmem>>, %arg3: memref<12x64xf32, #tpu.memory_space<vmem>>, %arg4: memref<4x64xf32, #tpu.memory_space<vmem>>, %arg5: memref<1x64xf32, #tpu.memory_space<vmem>>, %arg6: memref<32x32xf32, #tpu.memory_space<vmem>>, %arg7: memref<1x32xf32, #tpu.memory_space<vmem>>, %arg8: memref<32x32xf32, #tpu.memory_space<vmem>>, %arg9: memref<1x32xf32, #tpu.memory_space<vmem>>, %arg10: memref<1x32xf32, #tpu.memory_space<vmem>>, %arg11: memref<1x1xf32, #tpu.memory_space<vmem>>, %arg12: memref<1x32xf32, #tpu.memory_space<vmem>>, %arg13: memref<1x1xf32, #tpu.memory_space<vmem>>, %arg14: memref<2x1xf32, #tpu.memory_space<vmem>>, %arg15: memref<2x1xf32, #tpu.memory_space<vmem>>) attributes {dimension_semantics = [#tpu.dimension_semantics<parallel>], iteration_bounds = array<i64: 1>, scalar_prefetch = 0 : i64, scratch_operands = 0 : i64, tpu.core_type = #tpu.core_type<tc>, window_params = [{transform_indices = @transform_0, window_bounds = array<i64: 2, 12>}, {transform_indices = @transform_1, window_bounds = array<i64: 2, 4>}, {pipeline_mode = #tpu.pipeline_mode<synchronous>, transform_indices = @transform_2, window_bounds = array<i64: 12, 64>}, {pipeline_mode = #tpu.pipeline_mode<synchronous>, transform_indices = @transform_3, window_bounds = array<i64: 4, 64>}, {pipeline_mode = #tpu.pipeline_mode<synchronous>, transform_indices = @transform_4, window_bounds = array<i64: 1, 64>}, {pipeline_mode = #tpu.pipeline_mode<synchronous>, transform_indices = @transform_5, window_bounds = array<i64: 32, 32>}, {pipeline_mode = #tpu.pipeline_mode<synchronous>, transform_indices = @transform_6, window_bounds = array<i64: 1, 32>}, {pipeline_mode = #tpu.pipeline_mode<synchronous>, transform_indices = @transform_7, window_bounds = array<i64: 32, 32>}, {pipeline_mode = #tpu.pipeline_mode<synchronous>, transform_indices = @transform_8, window_bounds = array<i64: 1, 32>}, {pipeline_mode = #tpu.pipeline_mode<synchronous>, transform_indices = @transform_9, window_bounds = array<i64: 1, 32>}, {pipeline_mode = #tpu.pipeline_mode<synchronous>, transform_indices = @transform_10, window_bounds = array<i64: 1, 1>}, {pipeline_mode = #tpu.pipeline_mode<synchronous>, transform_indices = @transform_11, window_bounds = array<i64: 1, 32>}, {pipeline_mode = #tpu.pipeline_mode<synchronous>, transform_indices = @transform_12, window_bounds = array<i64: 1, 1>}, {transform_indices = @transform_13, window_bounds = array<i64: 2, 1>}, {transform_indices = @transform_14, window_bounds = array<i64: 2, 1>}]} {
    %c0 = arith.constant 0 : index
    %c0_0 = arith.constant 0 : index
    %0 = vector.load %arg1[%c0, %c0_0] : memref<2x12xf32, #tpu.memory_space<vmem>>, vector<2x12xf32>
    %c0_1 = arith.constant 0 : index
    %c0_2 = arith.constant 0 : index
    %1 = vector.load %arg2[%c0_1, %c0_2] : memref<2x4xf32, #tpu.memory_space<vmem>>, vector<2x4xf32>
    %c0_3 = arith.constant 0 : index
    %c0_4 = arith.constant 0 : index
    %2 = vector.load %arg3[%c0_3, %c0_4] : memref<12x64xf32, #tpu.memory_space<vmem>>, vector<12x64xf32>
    %cst = arith.constant dense<0.000000e+00> : vector<2x64xf32>
    %3 = tpu.matmul %0, %2, %cst {dimension_numbers = #tpu.dot_dimension_numbers<[1], [0], [0], [1], [0, 0, 1, 1], [], []>} : vector<2x12xf32>, vector<12x64xf32>, vector<2x64xf32> -> vector<2x64xf32>
    %c0_5 = arith.constant 0 : index
    %c0_6 = arith.constant 0 : index
    %4 = vector.load %arg4[%c0_5, %c0_6] : memref<4x64xf32, #tpu.memory_space<vmem>>, vector<4x64xf32>
    %cst_7 = arith.constant dense<0.000000e+00> : vector<2x64xf32>
    %5 = tpu.matmul %1, %4, %cst_7 {dimension_numbers = #tpu.dot_dimension_numbers<[1], [0], [0], [1], [0, 0, 1, 1], [], []>} : vector<2x4xf32>, vector<4x64xf32>, vector<2x64xf32> -> vector<2x64xf32>
    %6 = arith.addf %3, %5 : vector<2x64xf32>
    %c0_8 = arith.constant 0 : index
    %c0_9 = arith.constant 0 : index
    %7 = vector.load %arg5[%c0_8, %c0_9] : memref<1x64xf32, #tpu.memory_space<vmem>>, vector<1x64xf32>
    %8 = vector.broadcast %7 : vector<1x64xf32> to vector<2x64xf32>
    %9 = arith.addf %6, %8 : vector<2x64xf32>
    %cst_10 = arith.constant 0.000000e+00 : f32
    %10 = vector.broadcast %cst_10 : f32 to vector<2x64xf32>
    %11 = arith.maximumf %9, %10 : vector<2x64xf32>
    %12 = vector.extract_strided_slice %11 {offsets = [0, 0], sizes = [2, 32], strides = [1, 1]} : vector<2x64xf32> to vector<2x32xf32>
    %13 = vector.extract_strided_slice %11 {offsets = [0, 32], sizes = [2, 32], strides = [1, 1]} : vector<2x64xf32> to vector<2x32xf32>
    %c0_11 = arith.constant 0 : index
    %c0_12 = arith.constant 0 : index
    %14 = vector.load %arg6[%c0_11, %c0_12] : memref<32x32xf32, #tpu.memory_space<vmem>>, vector<32x32xf32>
    %cst_13 = arith.constant dense<0.000000e+00> : vector<2x32xf32>
    %15 = tpu.matmul %12, %14, %cst_13 {dimension_numbers = #tpu.dot_dimension_numbers<[1], [0], [0], [1], [0, 0, 1, 1], [], []>} : vector<2x32xf32>, vector<32x32xf32>, vector<2x32xf32> -> vector<2x32xf32>
    %c0_14 = arith.constant 0 : index
    %c0_15 = arith.constant 0 : index
    %16 = vector.load %arg7[%c0_14, %c0_15] : memref<1x32xf32, #tpu.memory_space<vmem>>, vector<1x32xf32>
    %17 = vector.broadcast %16 : vector<1x32xf32> to vector<2x32xf32>
    %18 = arith.addf %15, %17 : vector<2x32xf32>
    %cst_16 = arith.constant 0.000000e+00 : f32
    %19 = vector.broadcast %cst_16 : f32 to vector<2x32xf32>
    %20 = arith.maximumf %18, %19 : vector<2x32xf32>
    %c0_17 = arith.constant 0 : index
    %c0_18 = arith.constant 0 : index
    %21 = vector.load %arg8[%c0_17, %c0_18] : memref<32x32xf32, #tpu.memory_space<vmem>>, vector<32x32xf32>
    %cst_19 = arith.constant dense<0.000000e+00> : vector<2x32xf32>
    %22 = tpu.matmul %13, %21, %cst_19 {dimension_numbers = #tpu.dot_dimension_numbers<[1], [0], [0], [1], [0, 0, 1, 1], [], []>} : vector<2x32xf32>, vector<32x32xf32>, vector<2x32xf32> -> vector<2x32xf32>
    %c0_20 = arith.constant 0 : index
    %c0_21 = arith.constant 0 : index
    %23 = vector.load %arg9[%c0_20, %c0_21] : memref<1x32xf32, #tpu.memory_space<vmem>>, vector<1x32xf32>
    %24 = vector.broadcast %23 : vector<1x32xf32> to vector<2x32xf32>
    %25 = arith.addf %22, %24 : vector<2x32xf32>
    %cst_22 = arith.constant 0.000000e+00 : f32
    %26 = vector.broadcast %cst_22 : f32 to vector<2x32xf32>
    %27 = arith.maximumf %25, %26 : vector<2x32xf32>
    %c0_23 = arith.constant 0 : index
    %c0_24 = arith.constant 0 : index
    %28 = vector.load %arg10[%c0_23, %c0_24] : memref<1x32xf32, #tpu.memory_space<vmem>>, vector<1x32xf32>
    %29 = vector.broadcast %28 : vector<1x32xf32> to vector<2x32xf32>
    %30 = arith.mulf %20, %29 : vector<2x32xf32>
    %cst_25 = arith.constant dense<0.000000e+00> : vector<2xf32>
    %31 = vector.multi_reduction <add>, %30, %cst_25 [1] : vector<2x32xf32> to vector<2xf32>
    %32 = vector.shape_cast %31 : vector<2xf32> to vector<2x1xf32>
    %c0_26 = arith.constant 0 : index
    %c0_27 = arith.constant 0 : index
    %33 = vector.load %arg11[%c0_26, %c0_27] : memref<1x1xf32, #tpu.memory_space<vmem>>, vector<1x1xf32>
    %34 = vector.broadcast %33 : vector<1x1xf32> to vector<2x1xf32>
    %35 = arith.addf %32, %34 : vector<2x1xf32>
    %c0_28 = arith.constant 0 : index
    %c0_29 = arith.constant 0 : index
    %36 = vector.load %arg12[%c0_28, %c0_29] : memref<1x32xf32, #tpu.memory_space<vmem>>, vector<1x32xf32>
    %37 = vector.broadcast %36 : vector<1x32xf32> to vector<2x32xf32>
    %38 = arith.mulf %27, %37 : vector<2x32xf32>
    %cst_30 = arith.constant dense<0.000000e+00> : vector<2xf32>
    %39 = vector.multi_reduction <add>, %38, %cst_30 [1] : vector<2x32xf32> to vector<2xf32>
    %40 = vector.shape_cast %39 : vector<2xf32> to vector<2x1xf32>
    %c0_31 = arith.constant 0 : index
    %c0_32 = arith.constant 0 : index
    %41 = vector.load %arg13[%c0_31, %c0_32] : memref<1x1xf32, #tpu.memory_space<vmem>>, vector<1x1xf32>
    %42 = vector.broadcast %41 : vector<1x1xf32> to vector<2x1xf32>
    %43 = arith.addf %40, %42 : vector<2x1xf32>
    %c0_33 = arith.constant 0 : index
    %c0_34 = arith.constant 0 : index
    %44 = vector.load %arg14[%c0_33, %c0_34] : memref<2x1xf32, #tpu.memory_space<vmem>>, vector<2x1xf32>
    tpu.vector_store %arg14[%c0_33, %c0_34], %35 {strides = array<i32>} : memref<2x1xf32, #tpu.memory_space<vmem>>, vector<2x1xf32>,
    %c0_35 = arith.constant 0 : index
    %c0_36 = arith.constant 0 : index
    %45 = vector.load %arg15[%c0_35, %c0_36] : memref<2x1xf32, #tpu.memory_space<vmem>>, vector<2x1xf32>
    tpu.vector_store %arg15[%c0_35, %c0_36], %43 {strides = array<i32>} : memref<2x1xf32, #tpu.memory_space<vmem>>, vector<2x1xf32>,
    return
  }
  func.func @transform_0(%arg0: i32) -> (i32, i32) {
    %c0_i32 = arith.constant 0 : i32
    %c0_i32_0 = arith.constant 0 : i32
    return %arg0, %c0_i32 : i32, i32
  }
  func.func @transform_1(%arg0: i32) -> (i32, i32) {
    %c0_i32 = arith.constant 0 : i32
    %c0_i32_0 = arith.constant 0 : i32
    return %arg0, %c0_i32 : i32, i32
  }
  func.func @transform_2(%arg0: i32) -> (i32, i32) {
    %c0_i32 = arith.constant 0 : i32
    %c0_i32_0 = arith.constant 0 : i32
    %c0_i32_1 = arith.constant 0 : i32
    return %c0_i32, %c0_i32_0 : i32, i32
  }
  func.func @transform_3(%arg0: i32) -> (i32, i32) {
    %c0_i32 = arith.constant 0 : i32
    %c0_i32_0 = arith.constant 0 : i32
    %c0_i32_1 = arith.constant 0 : i32
    return %c0_i32, %c0_i32_0 : i32, i32
  }
  func.func @transform_4(%arg0: i32) -> (i32, i32) {
    %c0_i32 = arith.constant 0 : i32
    %c0_i32_0 = arith.constant 0 : i32
    %c0_i32_1 = arith.constant 0 : i32
    return %c0_i32, %c0_i32_0 : i32, i32
  }
  func.func @transform_5(%arg0: i32) -> (i32, i32) {
    %c0_i32 = arith.constant 0 : i32
    %c0_i32_0 = arith.constant 0 : i32
    %c0_i32_1 = arith.constant 0 : i32
    return %c0_i32, %c0_i32_0 : i32, i32
  }
  func.func @transform_6(%arg0: i32) -> (i32, i32) {
    %c0_i32 = arith.constant 0 : i32
    %c0_i32_0 = arith.constant 0 : i32
    %c0_i32_1 = arith.constant 0 : i32
    return %c0_i32, %c0_i32_0 : i32, i32
  }
  func.func @transform_7(%arg0: i32) -> (i32, i32) {
    %c0_i32 = arith.constant 0 : i32
    %c0_i32_0 = arith.constant 0 : i32
    %c0_i32_1 = arith.constant 0 : i32
    return %c0_i32, %c0_i32_0 : i32, i32
  }
  func.func @transform_8(%arg0: i32) -> (i32, i32) {
    %c0_i32 = arith.constant 0 : i32
    %c0_i32_0 = arith.constant 0 : i32
    %c0_i32_1 = arith.constant 0 : i32
    return %c0_i32, %c0_i32_0 : i32, i32
  }
  func.func @transform_9(%arg0: i32) -> (i32, i32) {
    %c0_i32 = arith.constant 0 : i32
    %c0_i32_0 = arith.constant 0 : i32
    %c0_i32_1 = arith.constant 0 : i32
    return %c0_i32, %c0_i32_0 : i32, i32
  }
  func.func @transform_10(%arg0: i32) -> (i32, i32) {
    %c0_i32 = arith.constant 0 : i32
    %c0_i32_0 = arith.constant 0 : i32
    %c0_i32_1 = arith.constant 0 : i32
    return %c0_i32, %c0_i32_0 : i32, i32
  }
  func.func @transform_11(%arg0: i32) -> (i32, i32) {
    %c0_i32 = arith.constant 0 : i32
    %c0_i32_0 = arith.constant 0 : i32
    %c0_i32_1 = arith.constant 0 : i32
    return %c0_i32, %c0_i32_0 : i32, i32
  }
  func.func @transform_12(%arg0: i32) -> (i32, i32) {
    %c0_i32 = arith.constant 0 : i32
    %c0_i32_0 = arith.constant 0 : i32
    %c0_i32_1 = arith.constant 0 : i32
    return %c0_i32, %c0_i32_0 : i32, i32
  }
  func.func @transform_13(%arg0: i32) -> (i32, i32) {
    %c0_i32 = arith.constant 0 : i32
    %c0_i32_0 = arith.constant 0 : i32
    return %arg0, %c0_i32 : i32, i32
  }
  func.func @transform_14(%arg0: i32) -> (i32, i32) {
    %c0_i32 = arith.constant 0 : i32
    %c0_i32_0 = arith.constant 0 : i32
    return %arg0, %c0_i32 : i32, i32
  }
}

</mosaic_0001>

<llo_original>
// kernel: tpu_custom_call.1
$region0: #{tpu_custom_call.1}
  #allocation0 [shape = 'u32[]', space=smem, size = 0x4, offset = 0x4, fixed_abs, tag = 'smem constant byte address 0x4 - core index']
  #allocation1 [shape = 'u32[144,128]{1,0:T(1,128)}', space=vmem, size = 0x12000, scoped, tag = 'internal scratch']
  #allocation2 [shape = 'f32[1,1]{1,0:T(1,128)S(1)}', space=vmem, size = 0x200, scoped, tag = 'scoped memory for tpu_custom_call.1']
  #allocation3 [shape = 'f32[1,1]{1,0:T(1,128)S(1)}', space=vmem, size = 0x200, scoped, tag = 'scoped memory for tpu_custom_call.1']
  %s0 = inlined_call_operand.vmem [shape: f32[2,12], index: 0, kind: input, shape index: {}]
  %s1 = inlined_call_operand.hbm [shape: f32[2,4], index: 1, kind: input, shape index: {}]
  %s2 = inlined_call_operand.hbm [shape: f32[12,64], index: 2, kind: input, shape index: {}]
  %s3 = inlined_call_operand.hbm [shape: f32[4,64], index: 3, kind: input, shape index: {}]
  %s4 = inlined_call_operand.hbm [shape: f32[1,64], index: 4, kind: input, shape index: {}]
  %s5 = inlined_call_operand.hbm [shape: f32[32,32], index: 5, kind: input, shape index: {}]
  %s6 = inlined_call_operand.hbm [shape: f32[1,32], index: 6, kind: input, shape index: {}]
  %s7 = inlined_call_operand.vmem [shape: f32[32,32], index: 7, kind: input, shape index: {}]
  %s8 = inlined_call_operand.vmem [shape: f32[1,32], index: 8, kind: input, shape index: {}]
  %s9 = inlined_call_operand.vmem [shape: f32[1,32], index: 9, kind: input, shape index: {}]
  %s10 = inlined_call_operand.<no memory space> [shape: f32[1,1], index: 10, kind: input, shape index: {}]
  %s11 = inlined_call_operand.vmem [shape: f32[1,32], index: 11, kind: input, shape index: {}]
  %s12 = inlined_call_operand.<no memory space> [shape: f32[1,1], index: 12, kind: input, shape index: {}]
  %s13 = inlined_call_operand.vmem [shape: f32[2,1], index: 13, kind: output, shape index: {0}]
  %s14 = inlined_call_operand.vmem [shape: f32[2,1], index: 14, kind: output, shape index: {1}]
  %15 = xla_tuple %s13, %s14
  %s16 = sld [smem:[#allocation0]]
  $region94: #{tpu_custom_call.1} parent=0
    _
  %s18 = ssub.s32 1, %s16
  %s19 = scalar_select 0, %s18, %s16
  %v20 = vstv %s10
  %21 = vst [vmem:[#allocation2] sm:$0x1] %v20
  %v22 = vstv %s12
  %23 = vst [vmem:[#allocation3] sm:$0x1] %v22
  $region1: #{tpu_custom_call.1} parent=0
    #allocation4 [shape = 'u8[1024]{0}', space=vmem, size = 0x400, scoped, tag = 'input window, operand 1, single buffered']
    #allocation5 [shape = 's32[1]{0}', space=sflag, size = 0x4, scoped, tag = 'scoped memory for tpu_custom_call.1']
    #allocation6 [shape = 'u8[8192]{0}', space=vmem, size = 0x2000, scoped, tag = 'input window, operand 2, single buffered']
    #allocation7 [shape = 's32[1]{0}', space=sflag, size = 0x4, scoped, tag = 'scoped memory for tpu_custom_call.1']
    #allocation8 [shape = 'u8[2048]{0}', space=vmem, size = 0x800, scoped, tag = 'input window, operand 3, single buffered']
    #allocation9 [shape = 'u8[512]{0}', space=vmem, size = 0x400, scoped, tag = 'input window, operand 4, single buffered']
    #allocation10 [shape = 's32[1]{0}', space=sflag, size = 0x4, scoped, tag = 'scoped memory for tpu_custom_call.1']
    #allocation11 [shape = 'u8[16384]{0}', space=vmem, size = 0x4000, scoped, tag = 'input window, operand 5, single buffered']
    #allocation12 [shape = 'u8[512]{0}', space=vmem, size = 0x400, scoped, tag = 'input window, operand 6, single buffered']
    #allocation13 [shape = 's32[1]{0}', space=sflag, size = 0x4, scoped, tag = 'scoped memory for tpu_custom_call.1']
    %24 = vsyncpa [#allocation5], 0
    %25 = vsyncpa [#allocation7], 0
    %26 = vsyncpa [#allocation10], 0
    %27 = vsyncpa [#allocation13], 0
    // Predicated region
    $region2: #{tpu_custom_call.1} parent=1 // pred_check
      _
    $region3: #{tpu_custom_call.1} parent=1 // pred_check_branch
      %29 = sbr.rel (0) target = $region5
    $region4: #{tpu_custom_call.1} parent=1 // pred_region
      _
    $region5: #{tpu_custom_call.1} parent=1 // pred_fallthru
      _
    // Predicated region
    $region6: #{tpu_custom_call.1} parent=1 // pred_check
      _
    $region7: #{tpu_custom_call.1} parent=1 // pred_check_branch
      %31 = sbr.rel (0) target = $region9
    $region8: #{tpu_custom_call.1} parent=1 // pred_region
      %s33 = ssub.s32 32, 32
      %34 = vsyncadd [#allocation5], %s33
      %s36 = sshll.u32 [#allocation4], 4
      %s37 = int_to_ptr.vmem [resolvable:$true] %s36
      %39 = dma.hbm_to_vmem [thread:$0]  %s1, 32, %s37, [#allocation5]
    $region9: #{tpu_custom_call.1} parent=1 // pred_fallthru
      _
    // Predicated region
    $region10: #{tpu_custom_call.1} parent=1 // pred_check
      _
    $region11: #{tpu_custom_call.1} parent=1 // pred_check_branch
      %41 = sbr.rel (0) target = $region13
    $region12: #{tpu_custom_call.1} parent=1 // pred_region
      %s43 = ssub.s32 256, 256
      %44 = vsyncadd [#allocation7], %s43
      %s45 = sshll.u32 [#allocation6], 4
      %s46 = int_to_ptr.vmem [resolvable:$true] %s45
      %51 = dma.hbm_to_vmem [thread:$0]  %s2, 256, %s46, [#allocation7], 128, 128, 8
    $region13: #{tpu_custom_call.1} parent=1 // pred_fallthru
      _
    // Predicated region
    $region14: #{tpu_custom_call.1} parent=1 // pred_check
      _
    $region15: #{tpu_custom_call.1} parent=1 // pred_check_branch
      %53 = sbr.rel (0) target = $region17
    $region16: #{tpu_custom_call.1} parent=1 // pred_region
      %s55 = ssub.s32 64, 64
      %56 = vsyncadd [#allocation7], %s55
      %s58 = sshll.u32 [#allocation8], 4
      %s59 = int_to_ptr.vmem [resolvable:$true] %s58
      %61 = dma.hbm_to_vmem [thread:$0]  %s3, 64, %s59, [#allocation7]
    $region17: #{tpu_custom_call.1} parent=1 // pred_fallthru
      _
    // Predicated region
    $region18: #{tpu_custom_call.1} parent=1 // pred_check
      _
    $region19: #{tpu_custom_call.1} parent=1 // pred_check_branch
      %63 = sbr.rel (0) target = $region21
    $region20: #{tpu_custom_call.1} parent=1 // pred_region
      %s65 = ssub.s32 16, 16
      %66 = vsyncadd [#allocation10], %s65
      %s68 = sshll.u32 [#allocation9], 4
      %s69 = int_to_ptr.vmem [resolvable:$true] %s68
      %71 = dma.hbm_to_vmem [thread:$0]  %s4, 16, %s69, [#allocation10]
    $region21: #{tpu_custom_call.1} parent=1 // pred_fallthru
      _
    // Predicated region
    $region22: #{tpu_custom_call.1} parent=1 // pred_check
      _
    $region23: #{tpu_custom_call.1} parent=1 // pred_check_branch
      %73 = sbr.rel (0) target = $region25
    $region24: #{tpu_custom_call.1} parent=1 // pred_region
      %s75 = ssub.s32 512, 512
      %76 = vsyncadd [#allocation10], %s75
      %s77 = sshll.u32 [#allocation11], 4
      %s78 = int_to_ptr.vmem [resolvable:$true] %s77
      %83 = dma.hbm_to_vmem [thread:$0]  %s5, 512, %s78, [#allocation10], 128, 128, 8
    $region25: #{tpu_custom_call.1} parent=1 // pred_fallthru
      _
    // Predicated region
    $region26: #{tpu_custom_call.1} parent=1 // pred_check
      _
    $region27: #{tpu_custom_call.1} parent=1 // pred_check_branch
      %85 = sbr.rel (0) target = $region29
    $region28: #{tpu_custom_call.1} parent=1 // pred_region
      %s87 = ssub.s32 16, 16
      %88 = vsyncadd [#allocation13], %s87
      %s90 = sshll.u32 [#allocation12], 4
      %s91 = int_to_ptr.vmem [resolvable:$true] %s90
      %93 = dma.hbm_to_vmem [thread:$0]  %s6, 16, %s91, [#allocation13]
    $region29: #{tpu_custom_call.1} parent=1 // pred_fallthru
      _
    // Predicated region
    $region30: #{tpu_custom_call.1} parent=1 // pred_check
      _
    $region31: #{tpu_custom_call.1} parent=1 // pred_check_branch
      %95 = sbr.rel (0) target = $region33
    $region32: #{tpu_custom_call.1} parent=1 // pred_region
      _
    $region33: #{tpu_custom_call.1} parent=1 // pred_fallthru
      _
    // Predicated region
    $region34: #{tpu_custom_call.1} parent=1 // pred_check
      _
    $region35: #{tpu_custom_call.1} parent=1 // pred_check_branch
      %97 = sbr.rel (0) target = $region37
    $region36: #{tpu_custom_call.1} parent=1 // pred_region
      _
    $region37: #{tpu_custom_call.1} parent=1 // pred_fallthru
      _
    // Predicated region
    $region38: #{tpu_custom_call.1} parent=1 // pred_check
      _
    $region39: #{tpu_custom_call.1} parent=1 // pred_check_branch
      %99 = sbr.rel (0) target = $region41
    $region40: #{tpu_custom_call.1} parent=1 // pred_region
      _
    $region41: #{tpu_custom_call.1} parent=1 // pred_fallthru
      _
    // Predicated region
    $region42: #{tpu_custom_call.1} parent=1 // pred_check
      _
    $region43: #{tpu_custom_call.1} parent=1 // pred_check_branch
      %101 = sbr.rel (0) target = $region45
    $region44: #{tpu_custom_call.1} parent=1 // pred_region
      _
    $region45: #{tpu_custom_call.1} parent=1 // pred_fallthru
      _
    // Predicated region
    $region46: #{tpu_custom_call.1} parent=1 // pred_check
      _
    $region47: #{tpu_custom_call.1} parent=1 // pred_check_branch
      %103 = sbr.rel (0) target = $region49
    $region48: #{tpu_custom_call.1} parent=1 // pred_region
      _
    $region49: #{tpu_custom_call.1} parent=1 // pred_fallthru
      _
    // Predicated region
    $region50: #{tpu_custom_call.1} parent=1 // pred_check
      _
    $region51: #{tpu_custom_call.1} parent=1 // pred_check_branch
      %105 = sbr.rel (0) target = $region53
    $region52: #{tpu_custom_call.1} parent=1 // pred_region
      _
    $region53: #{tpu_custom_call.1} parent=1 // pred_fallthru
      _
    // Predicated region
    $region54: #{tpu_custom_call.1} parent=1 // pred_check
      _
    $region55: #{tpu_custom_call.1} parent=1 // pred_check_branch
      %107 = sbr.rel (0) target = $region57
    $region56: #{tpu_custom_call.1} parent=1 // pred_region
      %108 = dma.done [#allocation5], 32
    $region57: #{tpu_custom_call.1} parent=1 // pred_fallthru
      _
    // Predicated region
    $region58: #{tpu_custom_call.1} parent=1 // pred_check
      _
    $region59: #{tpu_custom_call.1} parent=1 // pred_check_branch
      %110 = sbr.rel (0) target = $region61
    $region60: #{tpu_custom_call.1} parent=1 // pred_region
      %111 = dma.done [#allocation7], 256
    $region61: #{tpu_custom_call.1} parent=1 // pred_fallthru
      _
    // Predicated region
    $region62: #{tpu_custom_call.1} parent=1 // pred_check
      _
    $region63: #{tpu_custom_call.1} parent=1 // pred_check_branch
      %113 = sbr.rel (0) target = $region65
    $region64: #{tpu_custom_call.1} parent=1 // pred_region
      %114 = dma.done [#allocation7], 64
    $region65: #{tpu_custom_call.1} parent=1 // pred_fallthru
      _
    // Predicated region
    $region66: #{tpu_custom_call.1} parent=1 // pred_check
      _
    $region67: #{tpu_custom_call.1} parent=1 // pred_check_branch
      %116 = sbr.rel (0) target = $region69
    $region68: #{tpu_custom_call.1} parent=1 // pred_region
      %117 = dma.done [#allocation10], 16
    $region69: #{tpu_custom_call.1} parent=1 // pred_fallthru
      _
    // Predicated region
    $region70: #{tpu_custom_call.1} parent=1 // pred_check
      _
    $region71: #{tpu_custom_call.1} parent=1 // pred_check_branch
      %119 = sbr.rel (0) target = $region73
    $region72: #{tpu_custom_call.1} parent=1 // pred_region
      %120 = dma.done [#allocation10], 512
    $region73: #{tpu_custom_call.1} parent=1 // pred_fallthru
      _
    // Predicated region
    $region74: #{tpu_custom_call.1} parent=1 // pred_check
      _
    $region75: #{tpu_custom_call.1} parent=1 // pred_check_branch
      %122 = sbr.rel (0) target = $region77
    $region76: #{tpu_custom_call.1} parent=1 // pred_region
      %123 = dma.done [#allocation13], 16
    $region77: #{tpu_custom_call.1} parent=1 // pred_fallthru
      _
    %v124 = vld [vmem:[%s0] sm:$0x3]
    %v125 = vld [vmem:[#allocation4] sm:$0x3]
    %v126 = vld [vmem:[#allocation6] sm:$0xff]
    %v127 = vld [vmem:[#allocation6 + $0x8] sm:$0xf]
    %v128 = vld [vmem:[#allocation8] sm:$0xf]
    %vm129 = vcmask 31744
    %v131 = vsel %vm129, %v125, 0
    %vm133 = vcmask 1043456
    %v135 = vsel %vm133, %v128, 0
    %137 = vmatprep.subr.mxu0 0.0
    %138 = vmatpush1.msra.mxu0 %v135
    %139 = vmatprep.subr.mxu0 0.0
    %140 = vmatpush1.msra.mxu0 0.0
    %141 = vmatprep.subr.mxu0 0.0
    %142 = vmatpush1.msra.mxu0 0.0
    %143 = vmatprep.subr.mxu0 0.0
    %144 = vmatpush1.msra.mxu0 0.0
    %145 = vmatprep.subr.mxu0 0.0
    %146 = vmatpush1.msra.mxu0 0.0
    %147 = vmatprep.subr.mxu0 0.0
    %148 = vmatpush1.msra.mxu0 0.0
    %149 = vmatprep.subr.mxu0 0.0
    %150 = vmatpush1.msra.mxu0 0.0
    %151 = vmatprep.subr.mxu0 0.0
    %152 = vmatpush1.msra.mxu0 0.0
    %153 = vmatprep.subr.mxu0 0.0
    %154 = vmatpush1.msra.mxu0 0.0
    %155 = vmatprep.subr.mxu0 0.0
    %156 = vmatpush1.msra.mxu0 0.0
    %157 = vmatprep.subr.mxu0 0.0
    %158 = vmatpush1.msra.mxu0 0.0
    %159 = vmatprep.subr.mxu0 0.0
    %160 = vmatpush1.msra.mxu0 0.0
    %161 = vmatprep.subr.mxu0 0.0
    %162 = vmatpush1.msra.mxu0 0.0
    %163 = vmatprep.subr.mxu0 0.0
    %164 = vmatpush1.msra.mxu0 0.0
    %165 = vmatprep.subr.mxu0 0.0
    %166 = vmatpush1.msra.mxu0 0.0
    %167 = vmatprep.subr.mxu0 0.0
    %168 = vmatpush1.msra.mxu0 0.0
    %169 = vmatprep.subr.mxu0 0.0
    %170 = vmatpush1.msra.mxu0 0.0
    %171 = vmatprep.subr.mxu0 0.0
    %172 = vmatpush1.msra.mxu0 0.0
    %173 = vmatprep.subr.mxu0 0.0
    %174 = vmatpush1.msra.mxu0 0.0
    %175 = vmatprep.subr.mxu0 0.0
    %176 = vmatpush1.msra.mxu0 0.0
    %177 = vmatprep.subr.mxu0 0.0
    %178 = vmatpush1.msra.mxu0 0.0
    %179 = vmatprep.subr.mxu0 0.0
    %180 = vmatpush1.msra.mxu0 0.0
    %181 = vmatprep.subr.mxu0 0.0
    %182 = vmatpush1.msra.mxu0 0.0
    %183 = vmatprep.subr.mxu0 0.0
    %184 = vmatpush1.msra.mxu0 0.0
    %185 = vmatprep.subr.mxu0 0.0
    %186 = vmatpush1.msra.mxu0 0.0
    %187 = vmatprep.subr.mxu0 0.0
    %188 = vmatpush1.msra.mxu0 0.0
    %189 = vmatprep.subr.mxu0 0.0
    %190 = vmatpush1.msra.mxu0 0.0
    %191 = vmatprep.subr.mxu0 0.0
    %192 = vmatpush1.msra.mxu0 0.0
    %193 = vmatprep.subr.mxu0 0.0
    %194 = vmatpush1.msra.mxu0 0.0
    %195 = vmatprep.subr.mxu0 0.0
    %196 = vmatpush1.msra.mxu0 0.0
    %197 = vmatprep.subr.mxu0 0.0
    %198 = vmatpush1.msra.mxu0 0.0
    %199 = vmatprep.subr.mxu0 0.0
    %200 = vmatpush1.msra.mxu0 0.0
    %201 = vmatprep.mubr.f32.mxu0 0.0
    %202 = vmatmul.mubr.f32.gmra.mrb[0].mxu0 %v131
    %v203 = vpop.f32.mrb[0].mxu0
    %v204 = vadd.f32 0.0, %v203
    %v205 = vpop.f32.mrb[0].mxu0
    %206 = vdwg.mxu0
    %vm207 = vcmask 97280
    %v209 = vsel %vm207, %v124, 0
    %v212 = vsel %vm133, %v127, 0
    %214 = vmatprep.subr.mxu0 0.0
    %215 = vmatpush1.msra.mxu0 %v126
    %216 = vmatprep.subr.mxu0 0.0
    %217 = vmatpush1.msra.mxu0 %v212
    %218 = vmatprep.subr.mxu0 0.0
    %219 = vmatpush1.msra.mxu0 0.0
    %220 = vmatprep.subr.mxu0 0.0
    %221 = vmatpush1.msra.mxu0 0.0
    %222 = vmatprep.subr.mxu0 0.0
    %223 = vmatpush1.msra.mxu0 0.0
    %224 = vmatprep.subr.mxu0 0.0
    %225 = vmatpush1.msra.mxu0 0.0
    %226 = vmatprep.subr.mxu0 0.0
    %227 = vmatpush1.msra.mxu0 0.0
    %228 = vmatprep.subr.mxu0 0.0
    %229 = vmatpush1.msra.mxu0 0.0
    %230 = vmatprep.subr.mxu0 0.0
    %231 = vmatpush1.msra.mxu0 0.0
    %232 = vmatprep.subr.mxu0 0.0
    %233 = vmatpush1.msra.mxu0 0.0
    %234 = vmatprep.subr.mxu0 0.0
    %235 = vmatpush1.msra.mxu0 0.0
    %236 = vmatprep.subr.mxu0 0.0
    %237 = vmatpush1.msra.mxu0 0.0
    %238 = vmatprep.subr.mxu0 0.0
    %239 = vmatpush1.msra.mxu0 0.0
    %240 = vmatprep.subr.mxu0 0.0
    %241 = vmatpush1.msra.mxu0 0.0
    %242 = vmatprep.subr.mxu0 0.0
    %243 = vmatpush1.msra.mxu0 0.0
    %244 = vmatprep.subr.mxu0 0.0
    %245 = vmatpush1.msra.mxu0 0.0
    %246 = vmatprep.subr.mxu0 0.0
    %247 = vmatpush1.msra.mxu0 0.0
    %248 = vmatprep.subr.mxu0 0.0
    %249 = vmatpush1.msra.mxu0 0.0
    %250 = vmatprep.subr.mxu0 0.0
    %251 = vmatpush1.msra.mxu0 0.0
    %252 = vmatprep.subr.mxu0 0.0
    %253 = vmatpush1.msra.mxu0 0.0
    %254 = vmatprep.subr.mxu0 0.0
    %255 = vmatpush1.msra.mxu0 0.0
    %256 = vmatprep.subr.mxu0 0.0
    %257 = vmatpush1.msra.mxu0 0.0
    %258 = vmatprep.subr.mxu0 0.0
    %259 = vmatpush1.msra.mxu0 0.0
    %260 = vmatprep.subr.mxu0 0.0
    %261 = vmatpush1.msra.mxu0 0.0
    %262 = vmatprep.subr.mxu0 0.0
    %263 = vmatpush1.msra.mxu0 0.0
    %264 = vmatprep.subr.mxu0 0.0
    %265 = vmatpush1.msra.mxu0 0.0
    %266 = vmatprep.subr.mxu0 0.0
    %267 = vmatpush1.msra.mxu0 0.0
    %268 = vmatprep.subr.mxu0 0.0
    %269 = vmatpush1.msra.mxu0 0.0
    %270 = vmatprep.subr.mxu0 0.0
    %271 = vmatpush1.msra.mxu0 0.0
    %272 = vmatprep.subr.mxu0 0.0
    %273 = vmatpush1.msra.mxu0 0.0
    %274 = vmatprep.subr.mxu0 0.0
    %275 = vmatpush1.msra.mxu0 0.0
    %276 = vmatprep.subr.mxu0 0.0
    %277 = vmatpush1.msra.mxu0 0.0
    %278 = vmatprep.mubr.f32.mxu0 0.0
    %279 = vmatmul.mubr.f32.gmra.mrb[0].mxu0 %v209
    %v280 = vpop.f32.mrb[0].mxu0
    %v281 = vadd.f32 %v204, %v280
    %v282 = vpop.f32.mrb[0].mxu0
    %283 = vdwg.mxu0
    %v284 = vld [vmem:[#allocation9] sm:$0x1]
    %v286 = vlaneseq
    %v287 = vshrl.u32 %v286, 7
    %v288 = vsub.s32 0, %v287
    %v289 = vrot.slane %v284, %v288
    %v291 = vadd.f32 %v281, %v289
    %v292 = vmax.f32 %v291, 0.0
    %v293 = vld [vmem:[#allocation11] sm:$0xff]
    %v294 = vld [vmem:[#allocation11 + $0x8] sm:$0xff]
    %v295 = vld [vmem:[#allocation11 + $0x10] sm:$0xff]
    %v296 = vld [vmem:[#allocation11 + $0x18] sm:$0xff]
    %v297 = vld [vmem:[#allocation12] sm:$0x1]
    %v299 = vlaneseq
    %v300 = vshrl.u32 %v299, 7
    %v301 = vsub.s32 0, %v300
    %v302 = vrot.slane %v297, %v301
    %vm304 = vcmask 261120
    %v306 = vsel %vm304, %v292, 0
    %308 = vmatprep.subr.mxu0 0.0
    %309 = vmatpush1.msra.mxu0 %v293
    %310 = vmatprep.subr.mxu0 0.0
    %311 = vmatpush1.msra.mxu0 %v294
    %312 = vmatprep.subr.mxu0 0.0
    %313 = vmatpush1.msra.mxu0 %v295
    %314 = vmatprep.subr.mxu0 0.0
    %315 = vmatpush1.msra.mxu0 %v296
    %316 = vmatprep.subr.mxu0 0.0
    %317 = vmatpush1.msra.mxu0 0.0
    %318 = vmatprep.subr.mxu0 0.0
    %319 = vmatpush1.msra.mxu0 0.0
    %320 = vmatprep.subr.mxu0 0.0
    %321 = vmatpush1.msra.mxu0 0.0
    %322 = vmatprep.subr.mxu0 0.0
    %323 = vmatpush1.msra.mxu0 0.0
    %324 = vmatprep.subr.mxu0 0.0
    %325 = vmatpush1.msra.mxu0 0.0
    %326 = vmatprep.subr.mxu0 0.0
    %327 = vmatpush1.msra.mxu0 0.0
    %328 = vmatprep.subr.mxu0 0.0
    %329 = vmatpush1.msra.mxu0 0.0
    %330 = vmatprep.subr.mxu0 0.0
    %331 = vmatpush1.msra.mxu0 0.0
    %332 = vmatprep.subr.mxu0 0.0
    %333 = vmatpush1.msra.mxu0 0.0
    %334 = vmatprep.subr.mxu0 0.0
    %335 = vmatpush1.msra.mxu0 0.0
    %336 = vmatprep.subr.mxu0 0.0
    %337 = vmatpush1.msra.mxu0 0.0
    %338 = vmatprep.subr.mxu0 0.0
    %339 = vmatpush1.msra.mxu0 0.0
    %340 = vmatprep.subr.mxu0 0.0
    %341 = vmatpush1.msra.mxu0 0.0
    %342 = vmatprep.subr.mxu0 0.0
    %343 = vmatpush1.msra.mxu0 0.0
    %344 = vmatprep.subr.mxu0 0.0
    %345 = vmatpush1.msra.mxu0 0.0
    %346 = vmatprep.subr.mxu0 0.0
    %347 = vmatpush1.msra.mxu0 0.0
    %348 = vmatprep.subr.mxu0 0.0
    %349 = vmatpush1.msra.mxu0 0.0
    %350 = vmatprep.subr.mxu0 0.0
    %351 = vmatpush1.msra.mxu0 0.0
    %352 = vmatprep.subr.mxu0 0.0
    %353 = vmatpush1.msra.mxu0 0.0
    %354 = vmatprep.subr.mxu0 0.0
    %355 = vmatpush1.msra.mxu0 0.0
    %356 = vmatprep.subr.mxu0 0.0
    %357 = vmatpush1.msra.mxu0 0.0
    %358 = vmatprep.subr.mxu0 0.0
    %359 = vmatpush1.msra.mxu0 0.0
    %360 = vmatprep.subr.mxu0 0.0
    %361 = vmatpush1.msra.mxu0 0.0
    %362 = vmatprep.subr.mxu0 0.0
    %363 = vmatpush1.msra.mxu0 0.0
    %364 = vmatprep.subr.mxu0 0.0
    %365 = vmatpush1.msra.mxu0 0.0
    %366 = vmatprep.subr.mxu0 0.0
    %367 = vmatpush1.msra.mxu0 0.0
    %368 = vmatprep.subr.mxu0 0.0
    %369 = vmatpush1.msra.mxu0 0.0
    %370 = vmatprep.subr.mxu0 0.0
    %371 = vmatpush1.msra.mxu0 0.0
    %372 = vmatprep.mubr.f32.mxu0 0.0
    %373 = vmatmul.mubr.f32.gmra.mrb[0].mxu0 %v306
    %v374 = vpop.f32.mrb[0].mxu0
    %v375 = vadd.f32 %v302, %v374
    %v376 = vpop.f32.mrb[0].mxu0
    %377 = vdwg.mxu0
    %v378 = vmax.f32 %v375, 0.0
    %v379 = vld [vmem:[%s7] sm:$0xff]
    %v380 = vld [vmem:[%s7 + $0x8] sm:$0xff]
    %v381 = vld [vmem:[%s7 + $0x10] sm:$0xff]
    %v382 = vld [vmem:[%s7 + $0x18] sm:$0xff]
    %v383 = vld [vmem:[%s8] sm:$0x1]
    %v385 = vlaneseq
    %v386 = vshrl.u32 %v385, 7
    %v387 = vsub.s32 0, %v386
    %v388 = vrot.slane %v383, %v387
    %390 = vrot.lane.b32.xlu0 %v292, 96
    %v391 = vpop.permute.xlu0 %390
    %v392 = vsel %vm304, %v391, 0
    %394 = vmatprep.subr.mxu0 0.0
    %395 = vmatpush1.msra.mxu0 %v379
    %396 = vmatprep.subr.mxu0 0.0
    %397 = vmatpush1.msra.mxu0 %v380
    %398 = vmatprep.subr.mxu0 0.0
    %399 = vmatpush1.msra.mxu0 %v381
    %400 = vmatprep.subr.mxu0 0.0
    %401 = vmatpush1.msra.mxu0 %v382
    %402 = vmatprep.subr.mxu0 0.0
    %403 = vmatpush1.msra.mxu0 0.0
    %404 = vmatprep.subr.mxu0 0.0
    %405 = vmatpush1.msra.mxu0 0.0
    %406 = vmatprep.subr.mxu0 0.0
    %407 = vmatpush1.msra.mxu0 0.0
    %408 = vmatprep.subr.mxu0 0.0
    %409 = vmatpush1.msra.mxu0 0.0
    %410 = vmatprep.subr.mxu0 0.0
    %411 = vmatpush1.msra.mxu0 0.0
    %412 = vmatprep.subr.mxu0 0.0
    %413 = vmatpush1.msra.mxu0 0.0
    %414 = vmatprep.subr.mxu0 0.0
    %415 = vmatpush1.msra.mxu0 0.0
    %416 = vmatprep.subr.mxu0 0.0
    %417 = vmatpush1.msra.mxu0 0.0
    %418 = vmatprep.subr.mxu0 0.0
    %419 = vmatpush1.msra.mxu0 0.0
    %420 = vmatprep.subr.mxu0 0.0
    %421 = vmatpush1.msra.mxu0 0.0
    %422 = vmatprep.subr.mxu0 0.0
    %423 = vmatpush1.msra.mxu0 0.0
    %424 = vmatprep.subr.mxu0 0.0
    %425 = vmatpush1.msra.mxu0 0.0
    %426 = vmatprep.subr.mxu0 0.0
    %427 = vmatpush1.msra.mxu0 0.0
    %428 = vmatprep.subr.mxu0 0.0
    %429 = vmatpush1.msra.mxu0 0.0
    %430 = vmatprep.subr.mxu0 0.0
    %431 = vmatpush1.msra.mxu0 0.0
    %432 = vmatprep.subr.mxu0 0.0
    %433 = vmatpush1.msra.mxu0 0.0
    %434 = vmatprep.subr.mxu0 0.0
    %435 = vmatpush1.msra.mxu0 0.0
    %436 = vmatprep.subr.mxu0 0.0
    %437 = vmatpush1.msra.mxu0 0.0
    %438 = vmatprep.subr.mxu0 0.0
    %439 = vmatpush1.msra.mxu0 0.0
    %440 = vmatprep.subr.mxu0 0.0
    %441 = vmatpush1.msra.mxu0 0.0
    %442 = vmatprep.subr.mxu0 0.0
    %443 = vmatpush1.msra.mxu0 0.0
    %444 = vmatprep.subr.mxu0 0.0
    %445 = vmatpush1.msra.mxu0 0.0
    %446 = vmatprep.subr.mxu0 0.0
    %447 = vmatpush1.msra.mxu0 0.0
    %448 = vmatprep.subr.mxu0 0.0
    %449 = vmatpush1.msra.mxu0 0.0
    %450 = vmatprep.subr.mxu0 0.0
    %451 = vmatpush1.msra.mxu0 0.0
    %452 = vmatprep.subr.mxu0 0.0
    %453 = vmatpush1.msra.mxu0 0.0
    %454 = vmatprep.subr.mxu0 0.0
    %455 = vmatpush1.msra.mxu0 0.0
    %456 = vmatprep.subr.mxu0 0.0
    %457 = vmatpush1.msra.mxu0 0.0
    %458 = vmatprep.mubr.f32.mxu0 0.0
    %459 = vmatmul.mubr.f32.gmra.mrb[0].mxu0 %v392
    %v460 = vpop.f32.mrb[0].mxu0
    %v461 = vadd.f32 %v388, %v460
    %v462 = vpop.f32.mrb[0].mxu0
    %463 = vdwg.mxu0
    %v464 = vmax.f32 %v461, 0.0
    %v465 = vld [vmem:[%s9] sm:$0x1]
    %v467 = vlaneseq
    %v468 = vshrl.u32 %v467, 7
    %v469 = vsub.s32 0, %v468
    %v470 = vrot.slane %v465, %v469
    %v472 = vmul.f32 %v378, %v470
    %vm473 = vcmask 254976
    %v474 = vsel %vm473, %v472, 0.0
    %475 = vadd.xlane.f32.xlu0 %v474
    %v476 = vpop.xlane.xlu0 %475
    %v477 = vld [vmem:[#allocation2] sm:$0x1]
    %v479 = vlaneseq
    %v480 = vshrl.u32 %v479, 7
    %v481 = vsub.s32 0, %v480
    %v482 = vrot.slane %v477, %v481
    %v484 = vadd.f32 %v476, %v482
    %v485 = vld [vmem:[%s11] sm:$0x1]
    %v487 = vlaneseq
    %v488 = vshrl.u32 %v487, 7
    %v489 = vsub.s32 0, %v488
    %v490 = vrot.slane %v485, %v489
    %v492 = vmul.f32 %v464, %v490
    %v493 = vsel %vm473, %v492, 0.0
    %494 = vadd.xlane.f32.xlu0 %v493
    %v495 = vpop.xlane.xlu0 %494
    %v496 = vld [vmem:[#allocation3] sm:$0x1]
    %v498 = vlaneseq
    %v499 = vshrl.u32 %v498, 7
    %v500 = vsub.s32 0, %v499
    %v501 = vrot.slane %v496, %v500
    %v503 = vadd.f32 %v495, %v501
    %vm504 = vcmask 1024
    %505 = vst.msk [vmem:[%s13] sm:$0x3] %vm504, %v484
    %506 = vst.msk [vmem:[%s14] sm:$0x3] %vm504, %v503
    // Predicated region
    $region78: #{tpu_custom_call.1} parent=1 // pred_check
      _
    $region79: #{tpu_custom_call.1} parent=1 // pred_check_branch
      %508 = sbr.rel (0) target = $region81
    $region80: #{tpu_custom_call.1} parent=1 // pred_region
      _
    $region81: #{tpu_custom_call.1} parent=1 // pred_fallthru
      _
    // Predicated region
    $region82: #{tpu_custom_call.1} parent=1 // pred_check
      _
    $region83: #{tpu_custom_call.1} parent=1 // pred_check_branch
      %510 = sbr.rel (0) target = $region85
    $region84: #{tpu_custom_call.1} parent=1 // pred_region
      _
    $region85: #{tpu_custom_call.1} parent=1 // pred_fallthru
      _
    // Predicated region
    $region86: #{tpu_custom_call.1} parent=1 // pred_check
      _
    $region87: #{tpu_custom_call.1} parent=1 // pred_check_branch
      %512 = sbr.rel (0) target = $region89
    $region88: #{tpu_custom_call.1} parent=1 // pred_region
      _
    $region89: #{tpu_custom_call.1} parent=1 // pred_fallthru
      _
    // Predicated region
    $region90: #{tpu_custom_call.1} parent=1 // pred_check
      _
    $region91: #{tpu_custom_call.1} parent=1 // pred_check_branch
      %514 = sbr.rel (0) target = $region93
    $region92: #{tpu_custom_call.1} parent=1 // pred_region
      _
    $region93: #{tpu_custom_call.1} parent=1 // pred_fallthru
      _
    %515 = vsyncpa [#allocation5], 1
    %516 = vsyncpa [#allocation7], 1
    %517 = vsyncpa [#allocation10], 1
    %518 = vsyncpa [#allocation13], 1

</llo_original>
